<compile_context>
chip_gen: v6e
topology: v6e:2x2x1
jax: 0.10.0
libtpu: 0.0.40
codegen_flags: <defaults>
</compile_context>

<pallas_src>
import functools

import jax
import jax.numpy as jnp
from jax.experimental import pallas as pl
from jax.experimental.pallas import tpu as pltpu


def bigram_kernel(ids_ref, tgt_ref, emb_ref, logits_ref, loss_ref, *, V, N, TN):
    # ids_ref, tgt_ref: (Np,) int32 in SMEM (scalar prefetch)
    # emb_ref:          (Vp, 1, Vp) f32 in VMEM, resident across the grid
    # logits_ref:       (TN, Vp) f32 VMEM output block for this grid step
    # loss_ref:         (1,) f32 SMEM output, accumulated across the grid
    i = pl.program_id(0)
    Vp = logits_ref.shape[1]

    @pl.when(i == 0)
    def _init():
        loss_ref[0] = jnp.float32(0.0)

    col = jax.lax.broadcasted_iota(jnp.int32, (1, Vp), 1)  # (1, Vp) lane ids
    lane_valid = col < V                                   # mask padded classes

    block_sum = jnp.zeros((1, 1), jnp.float32)
    for r in range(TN):                                    # static unroll (TN == 8)
        gidx = i * TN + r                                  # global token index
        tok = ids_ref[gidx]                                # SMEM scalar reads
        tgt = tgt_ref[gidx]

        row = emb_ref[tok]                                 # (1, Vp) embedding row gather
        logits_ref[pl.ds(r, 1), :] = row                   # lane-dense logits row

        # Stable cross entropy on the valid lanes only.
        masked = jnp.where(lane_valid, row, jnp.float32(-1e30))
        m = jnp.max(masked, axis=-1, keepdims=True)                          # (1, 1)
        lse = m + jnp.log(jnp.sum(jnp.exp(masked - m), axis=-1, keepdims=True))
        picked = jnp.sum(jnp.where(col == tgt, row, jnp.float32(0.0)),
                         axis=-1, keepdims=True)                             # (1, 1)
        contrib = jnp.where(gidx < N, lse - picked, jnp.float32(0.0))        # mask padded rows
        block_sum = block_sum + contrib

    loss_ref[0] = loss_ref[0] + block_sum[0, 0]

    @pl.when(i == pl.num_programs(0) - 1)
    def _finalize():
        loss_ref[0] = loss_ref[0] / jnp.float32(N)


def bigram_forward(x, target, emb_table, *, block_rows=8):
    """Equivalent of BigramModel.forward(x, target) -> (logits, loss)."""
    B, T = x.shape
    V = emb_table.shape[0]
    N = B * T

    LANE = 128
    Vp = ((V + LANE - 1) // LANE) * LANE      # pad classes to a lane multiple (65 -> 128)
    TN = block_rows                           # sublane-aligned rows per grid step
    Np = ((N + TN - 1) // TN) * TN            # pad token count to a block multiple
    grid = (Np // TN,)

    # Zero-pad the table.  Padded *columns* are masked to -1e30 inside the kernel
    # before the loss; padded *rows* are never indexed (token ids < V).  The table
    # is laid out (Vp, 1, Vp) so each row is gathered with a leading-axis index.
    emb_p = jnp.zeros((Vp, 1, Vp), jnp.float32).at[:V, 0, :V].set(
        emb_table.astype(jnp.float32))

    ids_flat = jnp.zeros((Np,), jnp.int32).at[:N].set(x.reshape(N).astype(jnp.int32))
    has_target = target is not None
    tgt_src = target if has_target else jnp.zeros_like(x)
    tgt_flat = jnp.zeros((Np,), jnp.int32).at[:N].set(
        tgt_src.reshape(N).astype(jnp.int32))

    kernel = functools.partial(bigram_kernel, V=V, N=N, TN=TN)

    logits_p, loss = pl.pallas_call(
        kernel,
        out_shape=(
            jax.ShapeDtypeStruct((Np, Vp), jnp.float32),
            jax.ShapeDtypeStruct((1,), jnp.float32),
        ),
        grid_spec=pltpu.PrefetchScalarGridSpec(
            num_scalar_prefetch=2,            # ids, targets -> SMEM scalar prefetch
            grid=grid,
            in_specs=[
                # Embedding table stays resident in VMEM (constant block index).
                pl.BlockSpec((Vp, 1, Vp), lambda i, ids, tgt: (0, 0, 0)),
            ],
            out_specs=(
                # Lane-dense (TN, 128) logits tiles, pipelined per grid step.
                pl.BlockSpec((TN, Vp), lambda i, ids, tgt: (i, 0)),
                # Scalar loss lives in SMEM (no masked single-lane VMEM store).
                pl.BlockSpec(memory_space=pltpu.MemorySpace.SMEM),
            ),
        ),
        compiler_params=pltpu.CompilerParams(
            # Loss is reduced across the row-block axis -> "arbitrary".
            dimension_semantics=("arbitrary",),
            vmem_limit_bytes=32 * 1024 * 1024,   # well under v7x's 64 MiB physical VMEM
        ),
    )(ids_flat, tgt_flat, emb_p)

    if has_target:
        # Matches PyTorch: logits returned as (B*T, C) together with the mean loss.
        return logits_p[:N, :V], loss[0]
    return logits_p[:N, :V].reshape(B, T, V), None

    # TODO(synk): generate() (autoregressive multinomial sampling loop) is host-side
    # control flow and is not implemented as a kernel.


def _reference(x, target, emb_table):
    # Pure-JAX reference for correctness check.
    logits = emb_table[x]                                # (B, T, V)
    B, T, V = logits.shape
    lf = logits.reshape(B * T, V)
    tf = target.reshape(B * T)
    lse = jax.scipy.special.logsumexp(lf, axis=-1)
    picked = jnp.take_along_axis(lf, tf[:, None], axis=-1)[:, 0]
    return lf, jnp.mean(lse - picked)


if __name__ == "__main__":
    vocab_size = 65   # e.g. tiny-shakespeare char vocab
    B, T = 2, 8

    key = jax.random.PRNGKey(0)
    k_emb, k_x, k_t = jax.random.split(key, 3)

    # nn.Embedding(vocab_size, vocab_size) weight ~ N(0, 1), deterministic here.
    emb_table = jax.random.normal(k_emb, (vocab_size, vocab_size), dtype=jnp.float32)
    x = jax.random.randint(k_x, (B, T), 0, vocab_size, dtype=jnp.int32)
    target = jax.random.randint(k_t, (B, T), 0, vocab_size, dtype=jnp.int32)

    logits, loss = bigram_forward(x, target, emb_table)
    jax.block_until_ready((logits, loss))

    ref_logits_flat, ref_loss = _reference(x, target, emb_table)
    assert logits.shape == (B * T, vocab_size)
    assert jnp.allclose(logits, ref_logits_flat, atol=1e-5)
    assert jnp.allclose(loss, ref_loss, atol=1e-5)

    # target=None path (PyTorch returns (B, T, C) logits and loss=None).
    logits_nt, loss_nt = bigram_forward(x, None, emb_table)
    jax.block_until_ready(logits_nt)
    assert logits_nt.shape == (B, T, vocab_size)
    assert loss_nt is None
    assert jnp.allclose(logits_nt.reshape(B * T, vocab_size), ref_logits_flat, atol=1e-5)

    print("KERNEL_OK")
</pallas_src>

<mosaic_0001>
module attributes {stable_mosaic.version = 11 : i64} {
  func.func @bigram_kernel(%arg0: i32, %arg1: memref<16xi32, #tpu.memory_space<smem>>, %arg2: memref<16xi32, #tpu.memory_space<smem>>, %arg3: memref<128x1x128xf32, #tpu.memory_space<vmem>>, %arg4: memref<8x128xf32, #tpu.memory_space<vmem>>, %arg5: memref<1xf32, #tpu.memory_space<smem>>) attributes {dimension_semantics = [#tpu.dimension_semantics<arbitrary>], iteration_bounds = array<i64: 2>, scalar_prefetch = 2 : i64, scratch_operands = 0 : i64, tpu.core_type = #tpu.core_type<tc>, window_params = [{pipeline_mode = #tpu.pipeline_mode<synchronous>, transform_indices = @transform_0, window_bounds = array<i64: 128, 1, 128>}, {transform_indices = @transform_1, window_bounds = array<i64: 8, 128>}, {transform_indices = @transform_2, window_bounds = array<i64: 1>}]} {
    %c0_i32 = arith.constant 0 : i32
    %0 = arith.cmpi eq, %arg0, %c0_i32 : i32
    %1 = arith.extui %0 : i1 to i32
    %c0_i32_0 = arith.constant 0 : i32
    %2 = arith.cmpi ne, %1, %c0_i32_0 : i32
    scf.if %2 {
      %cst_92 = arith.constant 0.000000e+00 : f32
      %c0_93 = arith.constant 0 : index
      %270 = memref.load %arg5[%c0_93] : memref<1xf32, #tpu.memory_space<smem>>
      memref.store %cst_92, %arg5[%c0_93] : memref<1xf32, #tpu.memory_space<smem>>
    } else {
    }
    %3 = tpu.iota {dimensions = array<i32: 1>} : vector<1x128xi32>
    %c65_i32 = arith.constant 65 : i32
    %4 = vector.broadcast %c65_i32 : i32 to vector<1x128xi32>
    %5 = arith.cmpi slt, %3, %4 : vector<1x128xi32>
    %cst = arith.constant 0.000000e+00 : f32
    %6 = vector.broadcast %cst : f32 to vector<1x1xf32>
    %c8_i32 = arith.constant 8 : i32
    %7 = arith.muli %arg0, %c8_i32 : i32
    %c0_i32_1 = arith.constant 0 : i32
    %8 = arith.addi %7, %c0_i32_1 : i32
    %9 = arith.index_cast %8 : i32 to index
    %10 = memref.load %arg1[%9] : memref<16xi32, #tpu.memory_space<smem>>
    %11 = arith.index_cast %8 : i32 to index
    %12 = memref.load %arg2[%11] : memref<16xi32, #tpu.memory_space<smem>>
    %13 = arith.index_cast %10 : i32 to index
    %c0 = arith.constant 0 : index
    %c0_2 = arith.constant 0 : index
    %14 = vector.load %arg3[%13, %c0, %c0_2] : memref<128x1x128xf32, #tpu.memory_space<vmem>>, vector<1x1x128xf32>
    %15 = vector.shape_cast %14 : vector<1x1x128xf32> to vector<1x128xf32>
    %c0_3 = arith.constant 0 : index
    %c0_4 = arith.constant 0 : index
    %16 = vector.load %arg4[%c0_3, %c0_4] : memref<8x128xf32, #tpu.memory_space<vmem>>, vector<1x128xf32>
    tpu.vector_store %arg4[%c0_3, %c0_4], %15 {strides = array<i32>} : memref<8x128xf32, #tpu.memory_space<vmem>>, vector<1x128xf32>,
    %cst_5 = arith.constant -1.000000e+30 : f32
    %17 = vector.broadcast %cst_5 : f32 to vector<1x128xf32>
    %18 = arith.select %5, %15, %17 : vector<1x128xi1>, vector<1x128xf32>
    %cst_6 = arith.constant dense<0xFF800000> : vector<1xf32>
    %19 = vector.multi_reduction <maximumf>, %18, %cst_6 [1] : vector<1x128xf32> to vector<1xf32>
    %20 = vector.shape_cast %19 : vector<1xf32> to vector<1x1xf32>
    %21 = vector.broadcast %20 : vector<1x1xf32> to vector<1x128xf32>
    %22 = arith.subf %18, %21 : vector<1x128xf32>
    %23 = math.exp %22 : vector<1x128xf32>
    %cst_7 = arith.constant dense<0.000000e+00> : vector<1xf32>
    %24 = vector.multi_reduction <add>, %23, %cst_7 [1] : vector<1x128xf32> to vector<1xf32>
    %25 = vector.shape_cast %24 : vector<1xf32> to vector<1x1xf32>
    %26 = math.log %25 : vector<1x1xf32>
    %27 = arith.addf %20, %26 : vector<1x1xf32>
    %28 = vector.broadcast %12 : i32 to vector<1x128xi32>
    %29 = arith.cmpi eq, %3, %28 : vector<1x128xi32>
    %cst_8 = arith.constant 0.000000e+00 : f32
    %30 = vector.broadcast %cst_8 : f32 to vector<1x128xf32>
    %31 = arith.select %29, %15, %30 : vector<1x128xi1>, vector<1x128xf32>
    %cst_9 = arith.constant dense<0.000000e+00> : vector<1xf32>
    %32 = vector.multi_reduction <add>, %31, %cst_9 [1] : vector<1x128xf32> to vector<1xf32>
    %33 = vector.shape_cast %32 : vector<1xf32> to vector<1x1xf32>
    %c16_i32 = arith.constant 16 : i32
    %34 = arith.cmpi slt, %8, %c16_i32 : i32
    %35 = arith.subf %27, %33 : vector<1x1xf32>
    %cst_10 = arith.constant 0.000000e+00 : f32
    %36 = vector.broadcast %cst_10 : f32 to vector<1x1xf32>
    %37 = arith.select %34, %35, %36 : vector<1x1xf32>
    %38 = arith.addf %6, %37 : vector<1x1xf32>
    %c8_i32_11 = arith.constant 8 : i32
    %39 = arith.muli %arg0, %c8_i32_11 : i32
    %c1_i32 = arith.constant 1 : i32
    %40 = arith.addi %39, %c1_i32 : i32
    %41 = arith.index_cast %40 : i32 to index
    %42 = memref.load %arg1[%41] : memref<16xi32, #tpu.memory_space<smem>>
    %43 = arith.index_cast %40 : i32 to index
    %44 = memref.load %arg2[%43] : memref<16xi32, #tpu.memory_space<smem>>
    %45 = arith.index_cast %42 : i32 to index
    %c0_12 = arith.constant 0 : index
    %c0_13 = arith.constant 0 : index
    %46 = vector.load %arg3[%45, %c0_12, %c0_13] : memref<128x1x128xf32, #tpu.memory_space<vmem>>, vector<1x1x128xf32>
    %47 = vector.shape_cast %46 : vector<1x1x128xf32> to vector<1x128xf32>
    %c1 = arith.constant 1 : index
    %c0_14 = arith.constant 0 : index
    %48 = vector.load %arg4[%c1, %c0_14] : memref<8x128xf32, #tpu.memory_space<vmem>>, vector<1x128xf32>
    tpu.vector_store %arg4[%c1, %c0_14], %47 {strides = array<i32>} : memref<8x128xf32, #tpu.memory_space<vmem>>, vector<1x128xf32>,
    %cst_15 = arith.constant -1.000000e+30 : f32
    %49 = vector.broadcast %cst_15 : f32 to vector<1x128xf32>
    %50 = arith.select %5, %47, %49 : vector<1x128xi1>, vector<1x128xf32>
    %cst_16 = arith.constant dense<0xFF800000> : vector<1xf32>
    %51 = vector.multi_reduction <maximumf>, %50, %cst_16 [1] : vector<1x128xf32> to vector<1xf32>
    %52 = vector.shape_cast %51 : vector<1xf32> to vector<1x1xf32>
    %53 = vector.broadcast %52 : vector<1x1xf32> to vector<1x128xf32>
    %54 = arith.subf %50, %53 : vector<1x128xf32>
    %55 = math.exp %54 : vector<1x128xf32>
    %cst_17 = arith.constant dense<0.000000e+00> : vector<1xf32>
    %56 = vector.multi_reduction <add>, %55, %cst_17 [1] : vector<1x128xf32> to vector<1xf32>
    %57 = vector.shape_cast %56 : vector<1xf32> to vector<1x1xf32>
    %58 = math.log %57 : vector<1x1xf32>
    %59 = arith.addf %52, %58 : vector<1x1xf32>
    %60 = vector.broadcast %44 : i32 to vector<1x128xi32>
    %61 = arith.cmpi eq, %3, %60 : vector<1x128xi32>
    %cst_18 = arith.constant 0.000000e+00 : f32
    %62 = vector.broadcast %cst_18 : f32 to vector<1x128xf32>
    %63 = arith.select %61, %47, %62 : vector<1x128xi1>, vector<1x128xf32>
    %cst_19 = arith.constant dense<0.000000e+00> : vector<1xf32>
    %64 = vector.multi_reduction <add>, %63, %cst_19 [1] : vector<1x128xf32> to vector<1xf32>
    %65 = vector.shape_cast %64 : vector<1xf32> to vector<1x1xf32>
    %c16_i32_20 = arith.constant 16 : i32
    %66 = arith.cmpi slt, %40, %c16_i32_20 : i32
    %67 = arith.subf %59, %65 : vector<1x1xf32>
    %cst_21 = arith.constant 0.000000e+00 : f32
    %68 = vector.broadcast %cst_21 : f32 to vector<1x1xf32>
    %69 = arith.select %66, %67, %68 : vector<1x1xf32>
    %70 = arith.addf %38, %69 : vector<1x1xf32>
    %c8_i32_22 = arith.constant 8 : i32
    %71 = arith.muli %arg0, %c8_i32_22 : i32
    %c2_i32 = arith.constant 2 : i32
    %72 = arith.addi %71, %c2_i32 : i32
    %73 = arith.index_cast %72 : i32 to index
    %74 = memref.load %arg1[%73] : memref<16xi32, #tpu.memory_space<smem>>
    %75 = arith.index_cast %72 : i32 to index
    %76 = memref.load %arg2[%75] : memref<16xi32, #tpu.memory_space<smem>>
    %77 = arith.index_cast %74 : i32 to index
    %c0_23 = arith.constant 0 : index
    %c0_24 = arith.constant 0 : index
    %78 = vector.load %arg3[%77, %c0_23, %c0_24] : memref<128x1x128xf32, #tpu.memory_space<vmem>>, vector<1x1x128xf32>
    %79 = vector.shape_cast %78 : vector<1x1x128xf32> to vector<1x128xf32>
    %c2 = arith.constant 2 : index
    %c0_25 = arith.constant 0 : index
    %80 = vector.load %arg4[%c2, %c0_25] : memref<8x128xf32, #tpu.memory_space<vmem>>, vector<1x128xf32>
    tpu.vector_store %arg4[%c2, %c0_25], %79 {strides = array<i32>} : memref<8x128xf32, #tpu.memory_space<vmem>>, vector<1x128xf32>,
    %cst_26 = arith.constant -1.000000e+30 : f32
    %81 = vector.broadcast %cst_26 : f32 to vector<1x128xf32>
    %82 = arith.select %5, %79, %81 : vector<1x128xi1>, vector<1x128xf32>
    %cst_27 = arith.constant dense<0xFF800000> : vector<1xf32>
    %83 = vector.multi_reduction <maximumf>, %82, %cst_27 [1] : vector<1x128xf32> to vector<1xf32>
    %84 = vector.shape_cast %83 : vector<1xf32> to vector<1x1xf32>
    %85 = vector.broadcast %84 : vector<1x1xf32> to vector<1x128xf32>
    %86 = arith.subf %82, %85 : vector<1x128xf32>
    %87 = math.exp %86 : vector<1x128xf32>
    %cst_28 = arith.constant dense<0.000000e+00> : vector<1xf32>
    %88 = vector.multi_reduction <add>, %87, %cst_28 [1] : vector<1x128xf32> to vector<1xf32>
    %89 = vector.shape_cast %88 : vector<1xf32> to vector<1x1xf32>
    %90 = math.log %89 : vector<1x1xf32>
    %91 = arith.addf %84, %90 : vector<1x1xf32>
    %92 = vector.broadcast %76 : i32 to vector<1x128xi32>
    %93 = arith.cmpi eq, %3, %92 : vector<1x128xi32>
    %cst_29 = arith.constant 0.000000e+00 : f32
    %94 = vector.broadcast %cst_29 : f32 to vector<1x128xf32>
    %95 = arith.select %93, %79, %94 : vector<1x128xi1>, vector<1x128xf32>
    %cst_30 = arith.constant dense<0.000000e+00> : vector<1xf32>
    %96 = vector.multi_reduction <add>, %95, %cst_30 [1] : vector<1x128xf32> to vector<1xf32>
    %97 = vector.shape_cast %96 : vector<1xf32> to vector<1x1xf32>
    %c16_i32_31 = arith.constant 16 : i32
    %98 = arith.cmpi slt, %72, %c16_i32_31 : i32
    %99 = arith.subf %91, %97 : vector<1x1xf32>
    %cst_32 = arith.constant 0.000000e+00 : f32
    %100 = vector.broadcast %cst_32 : f32 to vector<1x1xf32>
    %101 = arith.select %98, %99, %100 : vector<1x1xf32>
    %102 = arith.addf %70, %101 : vector<1x1xf32>
    %c8_i32_33 = arith.constant 8 : i32
    %103 = arith.muli %arg0, %c8_i32_33 : i32
    %c3_i32 = arith.constant 3 : i32
    %104 = arith.addi %103, %c3_i32 : i32
    %105 = arith.index_cast %104 : i32 to index
    %106 = memref.load %arg1[%105] : memref<16xi32, #tpu.memory_space<smem>>
    %107 = arith.index_cast %104 : i32 to index
    %108 = memref.load %arg2[%107] : memref<16xi32, #tpu.memory_space<smem>>
    %109 = arith.index_cast %106 : i32 to index
    %c0_34 = arith.constant 0 : index
    %c0_35 = arith.constant 0 : index
    %110 = vector.load %arg3[%109, %c0_34, %c0_35] : memref<128x1x128xf32, #tpu.memory_space<vmem>>, vector<1x1x128xf32>
    %111 = vector.shape_cast %110 : vector<1x1x128xf32> to vector<1x128xf32>
    %c3 = arith.constant 3 : index
    %c0_36 = arith.constant 0 : index
    %112 = vector.load %arg4[%c3, %c0_36] : memref<8x128xf32, #tpu.memory_space<vmem>>, vector<1x128xf32>
    tpu.vector_store %arg4[%c3, %c0_36], %111 {strides = array<i32>} : memref<8x128xf32, #tpu.memory_space<vmem>>, vector<1x128xf32>,
    %cst_37 = arith.constant -1.000000e+30 : f32
    %113 = vector.broadcast %cst_37 : f32 to vector<1x128xf32>
    %114 = arith.select %5, %111, %113 : vector<1x128xi1>, vector<1x128xf32>
    %cst_38 = arith.constant dense<0xFF800000> : vector<1xf32>
    %115 = vector.multi_reduction <maximumf>, %114, %cst_38 [1] : vector<1x128xf32> to vector<1xf32>
    %116 = vector.shape_cast %115 : vector<1xf32> to vector<1x1xf32>
    %117 = vector.broadcast %116 : vector<1x1xf32> to vector<1x128xf32>
    %118 = arith.subf %114, %117 : vector<1x128xf32>
    %119 = math.exp %118 : vector<1x128xf32>
    %cst_39 = arith.constant dense<0.000000e+00> : vector<1xf32>
    %120 = vector.multi_reduction <add>, %119, %cst_39 [1] : vector<1x128xf32> to vector<1xf32>
    %121 = vector.shape_cast %120 : vector<1xf32> to vector<1x1xf32>
    %122 = math.log %121 : vector<1x1xf32>
    %123 = arith.addf %116, %122 : vector<1x1xf32>
    %124 = vector.broadcast %108 : i32 to vector<1x128xi32>
    %125 = arith.cmpi eq, %3, %124 : vector<1x128xi32>
    %cst_40 = arith.constant 0.000000e+00 : f32
    %126 = vector.broadcast %cst_40 : f32 to vector<1x128xf32>
    %127 = arith.select %125, %111, %126 : vector<1x128xi1>, vector<1x128xf32>
    %cst_41 = arith.constant dense<0.000000e+00> : vector<1xf32>
    %128 = vector.multi_reduction <add>, %127, %cst_41 [1] : vector<1x128xf32> to vector<1xf32>
    %129 = vector.shape_cast %128 : vector<1xf32> to vector<1x1xf32>
    %c16_i32_42 = arith.constant 16 : i32
    %130 = arith.cmpi slt, %104, %c16_i32_42 : i32
    %131 = arith.subf %123, %129 : vector<1x1xf32>
    %cst_43 = arith.constant 0.000000e+00 : f32
    %132 = vector.broadcast %cst_43 : f32 to vector<1x1xf32>
    %133 = arith.select %130, %131, %132 : vector<1x1xf32>
    %134 = arith.addf %102, %133 : vector<1x1xf32>
    %c8_i32_44 = arith.constant 8 : i32
    %135 = arith.muli %arg0, %c8_i32_44 : i32
    %c4_i32 = arith.constant 4 : i32
    %136 = arith.addi %135, %c4_i32 : i32
    %137 = arith.index_cast %136 : i32 to index
    %138 = memref.load %arg1[%137] : memref<16xi32, #tpu.memory_space<smem>>
    %139 = arith.index_cast %136 : i32 to index
    %140 = memref.load %arg2[%139] : memref<16xi32, #tpu.memory_space<smem>>
    %141 = arith.index_cast %138 : i32 to index
    %c0_45 = arith.constant 0 : index
    %c0_46 = arith.constant 0 : index
    %142 = vector.load %arg3[%141, %c0_45, %c0_46] : memref<128x1x128xf32, #tpu.memory_space<vmem>>, vector<1x1x128xf32>
    %143 = vector.shape_cast %142 : vector<1x1x128xf32> to vector<1x128xf32>
    %c4 = arith.constant 4 : index
    %c0_47 = arith.constant 0 : index
    %144 = vector.load %arg4[%c4, %c0_47] : memref<8x128xf32, #tpu.memory_space<vmem>>, vector<1x128xf32>
    tpu.vector_store %arg4[%c4, %c0_47], %143 {strides = array<i32>} : memref<8x128xf32, #tpu.memory_space<vmem>>, vector<1x128xf32>,
    %cst_48 = arith.constant -1.000000e+30 : f32
    %145 = vector.broadcast %cst_48 : f32 to vector<1x128xf32>
    %146 = arith.select %5, %143, %145 : vector<1x128xi1>, vector<1x128xf32>
    %cst_49 = arith.constant dense<0xFF800000> : vector<1xf32>
    %147 = vector.multi_reduction <maximumf>, %146, %cst_49 [1] : vector<1x128xf32> to vector<1xf32>
    %148 = vector.shape_cast %147 : vector<1xf32> to vector<1x1xf32>
    %149 = vector.broadcast %148 : vector<1x1xf32> to vector<1x128xf32>
    %150 = arith.subf %146, %149 : vector<1x128xf32>
    %151 = math.exp %150 : vector<1x128xf32>
    %cst_50 = arith.constant dense<0.000000e+00> : vector<1xf32>
    %152 = vector.multi_reduction <add>, %151, %cst_50 [1] : vector<1x128xf32> to vector<1xf32>
    %153 = vector.shape_cast %152 : vector<1xf32> to vector<1x1xf32>
    %154 = math.log %153 : vector<1x1xf32>
    %155 = arith.addf %148, %154 : vector<1x1xf32>
    %156 = vector.broadcast %140 : i32 to vector<1x128xi32>
    %157 = arith.cmpi eq, %3, %156 : vector<1x128xi32>
    %cst_51 = arith.constant 0.000000e+00 : f32
    %158 = vector.broadcast %cst_51 : f32 to vector<1x128xf32>
    %159 = arith.select %157, %143, %158 : vector<1x128xi1>, vector<1x128xf32>
    %cst_52 = arith.constant dense<0.000000e+00> : vector<1xf32>
    %160 = vector.multi_reduction <add>, %159, %cst_52 [1] : vector<1x128xf32> to vector<1xf32>
    %161 = vector.shape_cast %160 : vector<1xf32> to vector<1x1xf32>
    %c16_i32_53 = arith.constant 16 : i32
    %162 = arith.cmpi slt, %136, %c16_i32_53 : i32
    %163 = arith.subf %155, %161 : vector<1x1xf32>
    %cst_54 = arith.constant 0.000000e+00 : f32
    %164 = vector.broadcast %cst_54 : f32 to vector<1x1xf32>
    %165 = arith.select %162, %163, %164 : vector<1x1xf32>
    %166 = arith.addf %134, %165 : vector<1x1xf32>
    %c8_i32_55 = arith.constant 8 : i32
    %167 = arith.muli %arg0, %c8_i32_55 : i32
    %c5_i32 = arith.constant 5 : i32
    %168 = arith.addi %167, %c5_i32 : i32
    %169 = arith.index_cast %168 : i32 to index
    %170 = memref.load %arg1[%169] : memref<16xi32, #tpu.memory_space<smem>>
    %171 = arith.index_cast %168 : i32 to index
    %172 = memref.load %arg2[%171] : memref<16xi32, #tpu.memory_space<smem>>
    %173 = arith.index_cast %170 : i32 to index
    %c0_56 = arith.constant 0 : index
    %c0_57 = arith.constant 0 : index
    %174 = vector.load %arg3[%173, %c0_56, %c0_57] : memref<128x1x128xf32, #tpu.memory_space<vmem>>, vector<1x1x128xf32>
    %175 = vector.shape_cast %174 : vector<1x1x128xf32> to vector<1x128xf32>
    %c5 = arith.constant 5 : index
    %c0_58 = arith.constant 0 : index
    %176 = vector.load %arg4[%c5, %c0_58] : memref<8x128xf32, #tpu.memory_space<vmem>>, vector<1x128xf32>
    tpu.vector_store %arg4[%c5, %c0_58], %175 {strides = array<i32>} : memref<8x128xf32, #tpu.memory_space<vmem>>, vector<1x128xf32>,
    %cst_59 = arith.constant -1.000000e+30 : f32
    %177 = vector.broadcast %cst_59 : f32 to vector<1x128xf32>
    %178 = arith.select %5, %175, %177 : vector<1x128xi1>, vector<1x128xf32>
    %cst_60 = arith.constant dense<0xFF800000> : vector<1xf32>
    %179 = vector.multi_reduction <maximumf>, %178, %cst_60 [1] : vector<1x128xf32> to vector<1xf32>
    %180 = vector.shape_cast %179 : vector<1xf32> to vector<1x1xf32>
    %181 = vector.broadcast %180 : vector<1x1xf32> to vector<1x128xf32>
    %182 = arith.subf %178, %181 : vector<1x128xf32>
    %183 = math.exp %182 : vector<1x128xf32>
    %cst_61 = arith.constant dense<0.000000e+00> : vector<1xf32>
    %184 = vector.multi_reduction <add>, %183, %cst_61 [1] : vector<1x128xf32> to vector<1xf32>
    %185 = vector.shape_cast %184 : vector<1xf32> to vector<1x1xf32>
    %186 = math.log %185 : vector<1x1xf32>
    %187 = arith.addf %180, %186 : vector<1x1xf32>
    %188 = vector.broadcast %172 : i32 to vector<1x128xi32>
    %189 = arith.cmpi eq, %3, %188 : vector<1x128xi32>
    %cst_62 = arith.constant 0.000000e+00 : f32
    %190 = vector.broadcast %cst_62 : f32 to vector<1x128xf32>
    %191 = arith.select %189, %175, %190 : vector<1x128xi1>, vector<1x128xf32>
    %cst_63 = arith.constant dense<0.000000e+00> : vector<1xf32>
    %192 = vector.multi_reduction <add>, %191, %cst_63 [1] : vector<1x128xf32> to vector<1xf32>
    %193 = vector.shape_cast %192 : vector<1xf32> to vector<1x1xf32>
    %c16_i32_64 = arith.constant 16 : i32
    %194 = arith.cmpi slt, %168, %c16_i32_64 : i32
    %195 = arith.subf %187, %193 : vector<1x1xf32>
    %cst_65 = arith.constant 0.000000e+00 : f32
    %196 = vector.broadcast %cst_65 : f32 to vector<1x1xf32>
    %197 = arith.select %194, %195, %196 : vector<1x1xf32>
    %198 = arith.addf %166, %197 : vector<1x1xf32>
    %c8_i32_66 = arith.constant 8 : i32
    %199 = arith.muli %arg0, %c8_i32_66 : i32
    %c6_i32 = arith.constant 6 : i32
    %200 = arith.addi %199, %c6_i32 : i32
    %201 = arith.index_cast %200 : i32 to index
    %202 = memref.load %arg1[%201] : memref<16xi32, #tpu.memory_space<smem>>
    %203 = arith.index_cast %200 : i32 to index
    %204 = memref.load %arg2[%203] : memref<16xi32, #tpu.memory_space<smem>>
    %205 = arith.index_cast %202 : i32 to index
    %c0_67 = arith.constant 0 : index
    %c0_68 = arith.constant 0 : index
    %206 = vector.load %arg3[%205, %c0_67, %c0_68] : memref<128x1x128xf32, #tpu.memory_space<vmem>>, vector<1x1x128xf32>
    %207 = vector.shape_cast %206 : vector<1x1x128xf32> to vector<1x128xf32>
    %c6 = arith.constant 6 : index
    %c0_69 = arith.constant 0 : index
    %208 = vector.load %arg4[%c6, %c0_69] : memref<8x128xf32, #tpu.memory_space<vmem>>, vector<1x128xf32>
    tpu.vector_store %arg4[%c6, %c0_69], %207 {strides = array<i32>} : memref<8x128xf32, #tpu.memory_space<vmem>>, vector<1x128xf32>,
    %cst_70 = arith.constant -1.000000e+30 : f32
    %209 = vector.broadcast %cst_70 : f32 to vector<1x128xf32>
    %210 = arith.select %5, %207, %209 : vector<1x128xi1>, vector<1x128xf32>
    %cst_71 = arith.constant dense<0xFF800000> : vector<1xf32>
    %211 = vector.multi_reduction <maximumf>, %210, %cst_71 [1] : vector<1x128xf32> to vector<1xf32>
    %212 = vector.shape_cast %211 : vector<1xf32> to vector<1x1xf32>
    %213 = vector.broadcast %212 : vector<1x1xf32> to vector<1x128xf32>
    %214 = arith.subf %210, %213 : vector<1x128xf32>
    %215 = math.exp %214 : vector<1x128xf32>
    %cst_72 = arith.constant dense<0.000000e+00> : vector<1xf32>
    %216 = vector.multi_reduction <add>, %215, %cst_72 [1] : vector<1x128xf32> to vector<1xf32>
    %217 = vector.shape_cast %216 : vector<1xf32> to vector<1x1xf32>
    %218 = math.log %217 : vector<1x1xf32>
    %219 = arith.addf %212, %218 : vector<1x1xf32>
    %220 = vector.broadcast %204 : i32 to vector<1x128xi32>
    %221 = arith.cmpi eq, %3, %220 : vector<1x128xi32>
    %cst_73 = arith.constant 0.000000e+00 : f32
    %222 = vector.broadcast %cst_73 : f32 to vector<1x128xf32>
    %223 = arith.select %221, %207, %222 : vector<1x128xi1>, vector<1x128xf32>
    %cst_74 = arith.constant dense<0.000000e+00> : vector<1xf32>
    %224 = vector.multi_reduction <add>, %223, %cst_74 [1] : vector<1x128xf32> to vector<1xf32>
    %225 = vector.shape_cast %224 : vector<1xf32> to vector<1x1xf32>
    %c16_i32_75 = arith.constant 16 : i32
    %226 = arith.cmpi slt, %200, %c16_i32_75 : i32
    %227 = arith.subf %219, %225 : vector<1x1xf32>
    %cst_76 = arith.constant 0.000000e+00 : f32
    %228 = vector.broadcast %cst_76 : f32 to vector<1x1xf32>
    %229 = arith.select %226, %227, %228 : vector<1x1xf32>
    %230 = arith.addf %198, %229 : vector<1x1xf32>
    %c8_i32_77 = arith.constant 8 : i32
    %231 = arith.muli %arg0, %c8_i32_77 : i32
    %c7_i32 = arith.constant 7 : i32
    %232 = arith.addi %231, %c7_i32 : i32
    %233 = arith.index_cast %232 : i32 to index
    %234 = memref.load %arg1[%233] : memref<16xi32, #tpu.memory_space<smem>>
    %235 = arith.index_cast %232 : i32 to index
    %236 = memref.load %arg2[%235] : memref<16xi32, #tpu.memory_space<smem>>
    %237 = arith.index_cast %234 : i32 to index
    %c0_78 = arith.constant 0 : index
    %c0_79 = arith.constant 0 : index
    %238 = vector.load %arg3[%237, %c0_78, %c0_79] : memref<128x1x128xf32, #tpu.memory_space<vmem>>, vector<1x1x128xf32>
    %239 = vector.shape_cast %238 : vector<1x1x128xf32> to vector<1x128xf32>
    %c7 = arith.constant 7 : index
    %c0_80 = arith.constant 0 : index
    %240 = vector.load %arg4[%c7, %c0_80] : memref<8x128xf32, #tpu.memory_space<vmem>>, vector<1x128xf32>
    tpu.vector_store %arg4[%c7, %c0_80], %239 {strides = array<i32>} : memref<8x128xf32, #tpu.memory_space<vmem>>, vector<1x128xf32>,
    %cst_81 = arith.constant -1.000000e+30 : f32
    %241 = vector.broadcast %cst_81 : f32 to vector<1x128xf32>
    %242 = arith.select %5, %239, %241 : vector<1x128xi1>, vector<1x128xf32>
    %cst_82 = arith.constant dense<0xFF800000> : vector<1xf32>
    %243 = vector.multi_reduction <maximumf>, %242, %cst_82 [1] : vector<1x128xf32> to vector<1xf32>
    %244 = vector.shape_cast %243 : vector<1xf32> to vector<1x1xf32>
    %245 = vector.broadcast %244 : vector<1x1xf32> to vector<1x128xf32>
    %246 = arith.subf %242, %245 : vector<1x128xf32>
    %247 = math.exp %246 : vector<1x128xf32>
    %cst_83 = arith.constant dense<0.000000e+00> : vector<1xf32>
    %248 = vector.multi_reduction <add>, %247, %cst_83 [1] : vector<1x128xf32> to vector<1xf32>
    %249 = vector.shape_cast %248 : vector<1xf32> to vector<1x1xf32>
    %250 = math.log %249 : vector<1x1xf32>
    %251 = arith.addf %244, %250 : vector<1x1xf32>
    %252 = vector.broadcast %236 : i32 to vector<1x128xi32>
    %253 = arith.cmpi eq, %3, %252 : vector<1x128xi32>
    %cst_84 = arith.constant 0.000000e+00 : f32
    %254 = vector.broadcast %cst_84 : f32 to vector<1x128xf32>
    %255 = arith.select %253, %239, %254 : vector<1x128xi1>, vector<1x128xf32>
    %cst_85 = arith.constant dense<0.000000e+00> : vector<1xf32>
    %256 = vector.multi_reduction <add>, %255, %cst_85 [1] : vector<1x128xf32> to vector<1xf32>
    %257 = vector.shape_cast %256 : vector<1xf32> to vector<1x1xf32>
    %c16_i32_86 = arith.constant 16 : i32
    %258 = arith.cmpi slt, %232, %c16_i32_86 : i32
    %259 = arith.subf %251, %257 : vector<1x1xf32>
    %cst_87 = arith.constant 0.000000e+00 : f32
    %260 = vector.broadcast %cst_87 : f32 to vector<1x1xf32>
    %261 = arith.select %258, %259, %260 : vector<1x1xf32>
    %262 = arith.addf %230, %261 : vector<1x1xf32>
    %c0_88 = arith.constant 0 : index
    %263 = memref.load %arg5[%c0_88] : memref<1xf32, #tpu.memory_space<smem>>
    %264 = vector.extract %262[0, 0] : f32 from vector<1x1xf32>
    %265 = arith.addf %263, %264 : f32
    %c0_89 = arith.constant 0 : index
    %266 = memref.load %arg5[%c0_89] : memref<1xf32, #tpu.memory_space<smem>>
    memref.store %265, %arg5[%c0_89] : memref<1xf32, #tpu.memory_space<smem>>
    %c1_i32_90 = arith.constant 1 : i32
    %267 = arith.cmpi eq, %arg0, %c1_i32_90 : i32
    %268 = arith.extui %267 : i1 to i32
    %c0_i32_91 = arith.constant 0 : i32
    %269 = arith.cmpi ne, %268, %c0_i32_91 : i32
    scf.if %269 {
      %c0_92 = arith.constant 0 : index
      %270 = memref.load %arg5[%c0_92] : memref<1xf32, #tpu.memory_space<smem>>
      %cst_93 = arith.constant 1.600000e+01 : f32
      %271 = arith.divf %270, %cst_93 : f32
      %c0_94 = arith.constant 0 : index
      %272 = memref.load %arg5[%c0_94] : memref<1xf32, #tpu.memory_space<smem>>
      memref.store %271, %arg5[%c0_94] : memref<1xf32, #tpu.memory_space<smem>>
    } else {
    }
    return
  }
  func.func @transform_0(%arg0: i32, %arg1: memref<16xi32, #tpu.memory_space<smem>>, %arg2: memref<16xi32, #tpu.memory_space<smem>>) -> (i32, i32, i32) {
    %c0_i32 = arith.constant 0 : i32
    %c0_i32_0 = arith.constant 0 : i32
    %c0_i32_1 = arith.constant 0 : i32
    %c0_i32_2 = arith.constant 0 : i32
    return %c0_i32, %c0_i32_0, %c0_i32_1 : i32, i32, i32
  }
  func.func @transform_1(%arg0: i32, %arg1: memref<16xi32, #tpu.memory_space<smem>>, %arg2: memref<16xi32, #tpu.memory_space<smem>>) -> (i32, i32) {
    %c0_i32 = arith.constant 0 : i32
    %c0_i32_0 = arith.constant 0 : i32
    return %arg0, %c0_i32 : i32, i32
  }
  func.func @transform_2(%arg0: i32, %arg1: memref<16xi32, #tpu.memory_space<smem>>, %arg2: memref<16xi32, #tpu.memory_space<smem>>) -> i32 {
    %c0_i32 = arith.constant 0 : i32
    %c0_i32_0 = arith.constant 0 : i32
    return %c0_i32 : i32
  }
}

</mosaic_0001>

<llo_original>
// kernel: tpu_custom_call.1
$region0: #{tpu_custom_call.1}
  #allocation0 [shape = 'u32[]', space=smem, size = 0x4, offset = 0x4, fixed_abs, tag = 'smem constant byte address 0x4 - core index']
  #allocation1 [shape = 'u32[144,128]{1,0:T(1,128)}', space=vmem, size = 0x12000, scoped, tag = 'internal scratch']
  #allocation2 [shape = 's32[1]{0}', space=sflag, size = 0x4, scoped, tag = 'scoped memory for tpu_custom_call.1']
  #allocation3 [shape = 'u8[512]{0}', space=smem, size = 0x200, scoped, tag = 'prefetched SMEM operand 0']
  #allocation4 [shape = 'u8[512]{0}', space=smem, size = 0x200, scoped, tag = 'prefetched SMEM operand 1']
  %s0 = inlined_call_operand.hbm [shape: s32[16], index: 0, kind: input, shape index: {}]
  %s1 = inlined_call_operand.vmem [shape: s32[16], index: 1, kind: input, shape index: {}]
  %s2 = inlined_call_operand.hbm [shape: f32[128,1,128], index: 2, kind: input, shape index: {}]
  %s3 = inlined_call_operand.hbm [shape: f32[16,128], index: 3, kind: output, shape index: {0}]
  %s4 = inlined_call_operand.hbm [shape: f32[1], index: 4, kind: output, shape index: {1}]
  %5 = xla_tuple %s3, %s4
  %s6 = sld [smem:[#allocation0]]
  $region57: #{tpu_custom_call.1} parent=0
    _
  %s8 = ssub.s32 1, %s6
  %s9 = scalar_select 0, %s8, %s6
  %11 = dma.hbm_to_smem %s0, 16, [#allocation3], [#allocation2]
  %s12 = sshll.u32 %s1, 4
  %s13 = int_to_ptr.vmem [resolvable:$true] %s12
  %15 = dma.vmem_to_smem %s13, 16, [#allocation4], [#allocation2]
  %16 = dma.done [#allocation2], 32
  %17 = sfence
  $region1: #{tpu_custom_call.1} parent=0
    #allocation5 [shape = 'u8[65536]{0}', space=vmem, size = 0x10000, scoped, tag = 'input window, operand 2, single buffered']
    #allocation6 [shape = 's32[2]{0}', space=sflag, size = 0x8, scoped, tag = 'scoped memory for tpu_custom_call.1']
    #allocation7 [shape = 's32[2]{0}', space=sflag, size = 0x8, scoped, tag = 'scoped memory for tpu_custom_call.1']
    #allocation8 [shape = 's32[2]{0}', space=sflag, size = 0x8, scoped, tag = 'scoped memory for tpu_custom_call.1']
    #allocation9 [shape = 'u8[8192]{0}', space=vmem, size = 0x2000, scoped, tag = 'output window, operand 0']
    #allocation10 [shape = 'u8[512]{0}', space=smem, size = 0x200, scoped, tag = 'output window, operand 1, single buffered']
    %18 = vsyncpa [#allocation6], 0
    %19 = vsyncpa [#allocation7], 0
    %s20 = scalar_lea.sflag [#allocation7], 1
    %21 = vsyncpa %s20, 0
    %22 = vsyncpa [#allocation8], 0
    loop: start=0, step=1, limit=4
    $region2: #{tpu_custom_call.1} parent=1 // loop_pre_header
      _
    $region3: #{tpu_custom_call.1} parent=1 // loop_header
      %s24 = sphi 0, %s28
      %p25 = scmp.ge.s32.totalorder %s24, 4
      %s32 = sphi 0, %s32
      %s34 = sphi 0, %s32
      %s35 = sphi 0, %s34
      %s49 = sphi 0, %s35
      %s55 = sphi 0, %s57
      %s58 = sphi 0, %s55
      %s59 = sphi 0, %s58
      %s75 = sphi 0, %s59
      %s79 = sphi 0, %s79
      %s81 = sphi 0, %s79
      %s82 = sphi 0, %s81
      %s96 = sphi 0, %s82
    $region4: #{tpu_custom_call.1} parent=1 // loop_header_branch
      %27 = sbr.rel (%p25) target = $region8
    $region5: #{tpu_custom_call.1} parent=1 // loop_body
      %s29 = ssub.s32 %s24, 1
      %s30 = ssub.s32 %s24, 2
      %s31 = sadd.s32 %s24, 1
      %s33 = sadd.s32 %s32, 1
      %p36 = scmp.eq.s32.totalorder %s24, 1
      %p37 = scmp.ne.s32.totalorder %s32, %s34
      %p38 = scmp.eq.s32.totalorder %s24, 0
      %p39 = por %p37, %p38
      %p40 = scmp.ne.s32.totalorder %s32, %s34
      %p41 = scmp.eq.s32.totalorder %s29, 1
      %p42 = por %p40, %p41
      %p43 = scmp.ne.s32.totalorder %s34, %s35
      %p44 = scmp.eq.s32.totalorder %s29, 0
      %p45 = por %p43, %p44
      %p46 = scmp.ne.s32.totalorder %s34, %s35
      %p47 = scmp.eq.s32.totalorder %s30, 1
      %p48 = por %p46, %p47
      %p50 = scmp.ne.s32.totalorder %s35, %s49
      %p51 = scmp.eq.s32.totalorder %s30, 0
      %p52 = por %p50, %p51
      %s53 = ssub.s32 %s24, %s31
      %p54 = scmp.eq.s32.totalorder %s53, 0
      %s56 = sadd.s32 %s55, 1
      %s57 = scalar_select %p54, %s55, %s56
      %p60 = pneg %p54
      %p61 = scmp.eq.s32.totalorder %s24, 1
      %p62 = por %p60, %p61
      %p63 = scmp.ne.s32.totalorder %s55, %s58
      %p64 = scmp.eq.s32.totalorder %s24, 0
      %p65 = por %p63, %p64
      %p66 = scmp.ne.s32.totalorder %s55, %s58
      %p67 = scmp.eq.s32.totalorder %s29, 1
      %p68 = por %p66, %p67
      %p69 = scmp.ne.s32.totalorder %s58, %s59
      %p70 = scmp.eq.s32.totalorder %s29, 0
      %p71 = por %p69, %p70
      %p72 = scmp.ne.s32.totalorder %s58, %s59
      %p73 = scmp.eq.s32.totalorder %s30, 1
      %p74 = por %p72, %p73
      %p76 = scmp.ne.s32.totalorder %s59, %s75
      %p77 = scmp.eq.s32.totalorder %s30, 0
      %p78 = por %p76, %p77
      %s80 = sadd.s32 %s79, 1
      %p83 = scmp.eq.s32.totalorder %s24, 1
      %p84 = scmp.ne.s32.totalorder %s79, %s81
      %p85 = scmp.eq.s32.totalorder %s24, 0
      %p86 = por %p84, %p85
      %p87 = scmp.ne.s32.totalorder %s79, %s81
      %p88 = scmp.eq.s32.totalorder %s29, 1
      %p89 = por %p87, %p88
      %p90 = scmp.ne.s32.totalorder %s81, %s82
      %p91 = scmp.eq.s32.totalorder %s29, 0
      %p92 = por %p90, %p91
      %p93 = scmp.ne.s32.totalorder %s81, %s82
      %p94 = scmp.eq.s32.totalorder %s30, 1
      %p95 = por %p93, %p94
      %p97 = scmp.ne.s32.totalorder %s82, %s96
      %p98 = scmp.eq.s32.totalorder %s30, 0
      %p99 = por %p97, %p98
      %p100 = scmp.le.s32.totalorder 1, %s24
      %p101 = scmp.lt.s32.totalorder %s24, 3
      %p102 = pnand %p100, %p101
      %p103 = pneg %p102
      // Predicated region
      $region9: #{tpu_custom_call.1} parent=5 // pred_check
        _
      $region10: #{tpu_custom_call.1} parent=5 // pred_check_branch
        %105 = sbr.rel (%p102) target = $region12
      $region11: #{tpu_custom_call.1} parent=5 // pred_region
        %s106 = ssub.s32 %s24, 1
        // Predicated region
        $region13: #{tpu_custom_call.1} parent=11 // pred_check
          %p107 = pneg %p45
        $region14: #{tpu_custom_call.1} parent=11 // pred_check_branch
          %109 = sbr.rel (%p107) target = $region16
        $region15: #{tpu_custom_call.1} parent=11 // pred_region
          %s111 = ssub.s32 2048, 2048
          %112 = vsyncadd [#allocation6], %s111
          %s113 = sshll.u32 [#allocation5], 4
          %s114 = int_to_ptr.vmem [resolvable:$true] %s113
          %119 = dma.hbm_to_vmem [thread:$0]  %s2, 2048, %s114, [#allocation6], 16, 16, 1
        $region16: #{tpu_custom_call.1} parent=11 // pred_fallthru
          _
      $region12: #{tpu_custom_call.1} parent=5 // pred_fallthru
        _
      %p120 = scmp.lt.s32.totalorder %s24, 2
      // Predicated region
      $region17: #{tpu_custom_call.1} parent=5 // pred_check
        %p121 = pneg %p120
      $region18: #{tpu_custom_call.1} parent=5 // pred_check_branch
        %123 = sbr.rel (%p121) target = $region20
      $region19: #{tpu_custom_call.1} parent=5 // pred_region
        _
      $region20: #{tpu_custom_call.1} parent=5 // pred_fallthru
        _
      %p124 = scmp.le.s32.totalorder 1, %s24
      %p125 = scmp.lt.s32.totalorder %s24, 3
      %p126 = pnand %p124, %p125
      %p127 = pneg %p126
      // Predicated region
      $region21: #{tpu_custom_call.1} parent=5 // pred_check
        _
      $region22: #{tpu_custom_call.1} parent=5 // pred_check_branch
        %129 = sbr.rel (%p126) target = $region24
      $region23: #{tpu_custom_call.1} parent=5 // pred_region
        %s130 = ssub.s32 %s24, 1
        // Predicated region
        $region25: #{tpu_custom_call.1} parent=23 // pred_check
          %p131 = pneg %p45
        $region26: #{tpu_custom_call.1} parent=23 // pred_check_branch
          %133 = sbr.rel (%p131) target = $region28
        $region27: #{tpu_custom_call.1} parent=23 // pred_region
          %134 = dma.done [#allocation6], 2048
        $region28: #{tpu_custom_call.1} parent=23 // pred_fallthru
          _
        %p135 = pneg %p45
        %p136 = pneg %p42
        %p137 = pneg %p71
        %p138 = pneg %p68
        %s139 = sand.u32 %s58, 1
        %s140 = scalar_lea.sflag [#allocation7], %s139
        %s141 = sand.u32 %s58, 1
        %s142 = smul.addr %s141, 8
        %s143 = scalar_lea.vmem [#allocation9], %s142
        %p144 = pneg %p92
        %p145 = pneg %p89
        %p146 = scmp.eq.s32.totalorder %s29, 0
        // Predicated region
        $region29: #{tpu_custom_call.1} parent=23 // pred_check
          %p147 = pneg %p146
        $region30: #{tpu_custom_call.1} parent=23 // pred_check_branch
          %149 = sbr.rel (%p147) target = $region32
        $region31: #{tpu_custom_call.1} parent=23 // pred_region
          %s150 = scalar_lea.smem [#allocation10], 0
          %151 = sst [smem:[%s150]] 0.0
        $region32: #{tpu_custom_call.1} parent=23 // pred_fallthru
          _
        %v152 = vlaneseq
        %v153 = vand.u32 %v152, 127
        %vm154 = vcmp.lt.s32.totalorder %v153, 65
        %s155 = smul.u32 %s29, 8
        %s156 = sld [smem:[#allocation3 + %s155]]
        %s157 = sld [smem:[#allocation4 + %s155]]
        %s158 = scalar_lea.vmem [#allocation5], %s156
        %v159 = vld [vmem:[%s158] sm:$0x1]
        %160 = vst [vmem:[%s143] sm:$0x1] %v159
        %v161 = vsel %vm154, %v159, -1e+30
        %vm162 = vcmask 1040384
        %v163 = vsel %vm162, %v161, -inf
        %164 = vmax.xlane.f32.xlu0 %v163
        %v165 = vpop.xlane.xlu0 %164
        %v166 = vsub.f32 %v161, %v165
        %v167 = vmul.f32 %v166, 1.442695
        %v168 = vpow.pop %v167
        %v169 = vsel %vm162, %v168, 0.0
        %170 = vadd.xlane.f32.xlu0 %v169
        %v171 = vpop.xlane.xlu0 %170
        %v172 = vlog2.pop %v171
        %v173 = vmul.f32 %v172, 0.6931472
        %v174 = vadd.f32 %v165, %v173
        %v175 = vstv %s157
        %vm176 = vcmp.eq.s32.totalorder %v153, %v175
        %v177 = vsel %vm176, %v159, 0.0
        %v178 = vsel %vm162, %v177, 0.0
        %179 = vadd.xlane.f32.xlu0 %v178
        %v180 = vpop.xlane.xlu0 %179
        %p181 = scmp.lt.s32.totalorder %s155, 16
        %v182 = vsub.f32 %v174, %v180
        %s183 = scalar_select %p181, 1, 0
        %v184 = vstv %s183
        %vm185 = vcmp.eq.s32.totalorder %v184, 1
        %v186 = vsel %vm185, %v182, 0.0
        %v187 = vadd.f32 %v186, 0.0
        %s188 = sadd.s32 %s155, 1
        %s189 = sld [smem:[#allocation3 + %s188]]
        %s190 = sld [smem:[#allocation4 + %s188]]
        %s191 = scalar_lea.vmem [#allocation5], %s189
        %v192 = vld [vmem:[%s191] sm:$0x1]
        %193 = vst [vmem:[%s143 + $0x1] sm:$0x1] %v192
        %v194 = vsel %vm154, %v192, -1e+30
        %v195 = vsel %vm162, %v194, -inf
        %196 = vmax.xlane.f32.xlu0 %v195
        %v197 = vpop.xlane.xlu0 %196
        %v198 = vsub.f32 %v194, %v197
        %v199 = vmul.f32 %v198, 1.442695
        %v200 = vpow.pop %v199
        %v201 = vsel %vm162, %v200, 0.0
        %202 = vadd.xlane.f32.xlu0 %v201
        %v203 = vpop.xlane.xlu0 %202
        %v204 = vlog2.pop %v203
        %v205 = vmul.f32 %v204, 0.6931472
        %v206 = vadd.f32 %v197, %v205
        %v207 = vstv %s190
        %vm208 = vcmp.eq.s32.totalorder %v153, %v207
        %v209 = vsel %vm208, %v192, 0.0
        %v210 = vsel %vm162, %v209, 0.0
        %211 = vadd.xlane.f32.xlu0 %v210
        %v212 = vpop.xlane.xlu0 %211
        %p213 = scmp.lt.s32.totalorder %s188, 16
        %v214 = vsub.f32 %v206, %v212
        %s215 = scalar_select %p213, 1, 0
        %v216 = vstv %s215
        %vm217 = vcmp.eq.s32.totalorder %v216, 1
        %v218 = vsel %vm217, %v214, 0.0
        %v219 = vadd.f32 %v187, %v218
        %s220 = sadd.s32 %s155, 2
        %s221 = sld [smem:[#allocation3 + %s220]]
        %s222 = sld [smem:[#allocation4 + %s220]]
        %s223 = scalar_lea.vmem [#allocation5], %s221
        %v224 = vld [vmem:[%s223] sm:$0x1]
        %225 = vst [vmem:[%s143 + $0x2] sm:$0x1] %v224
        %v226 = vsel %vm154, %v224, -1e+30
        %v227 = vsel %vm162, %v226, -inf
        %228 = vmax.xlane.f32.xlu0 %v227
        %v229 = vpop.xlane.xlu0 %228
        %v230 = vsub.f32 %v226, %v229
        %v231 = vmul.f32 %v230, 1.442695
        %v232 = vpow.pop %v231
        %v233 = vsel %vm162, %v232, 0.0
        %234 = vadd.xlane.f32.xlu0 %v233
        %v235 = vpop.xlane.xlu0 %234
        %v236 = vlog2.pop %v235
        %v237 = vmul.f32 %v236, 0.6931472
        %v238 = vadd.f32 %v229, %v237
        %v239 = vstv %s222
        %vm240 = vcmp.eq.s32.totalorder %v153, %v239
        %v241 = vsel %vm240, %v224, 0.0
        %v242 = vsel %vm162, %v241, 0.0
        %243 = vadd.xlane.f32.xlu0 %v242
        %v244 = vpop.xlane.xlu0 %243
        %p245 = scmp.lt.s32.totalorder %s220, 16
        %v246 = vsub.f32 %v238, %v244
        %s247 = scalar_select %p245, 1, 0
        %v248 = vstv %s247
        %vm249 = vcmp.eq.s32.totalorder %v248, 1
        %v250 = vsel %vm249, %v246, 0.0
        %v251 = vadd.f32 %v219, %v250
        %s252 = sadd.s32 %s155, 3
        %s253 = sld [smem:[#allocation3 + %s252]]
        %s254 = sld [smem:[#allocation4 + %s252]]
        %s255 = scalar_lea.vmem [#allocation5], %s253
        %v256 = vld [vmem:[%s255] sm:$0x1]
        %257 = vst [vmem:[%s143 + $0x3] sm:$0x1] %v256
        %v258 = vsel %vm154, %v256, -1e+30
        %v259 = vsel %vm162, %v258, -inf
        %260 = vmax.xlane.f32.xlu0 %v259
        %v261 = vpop.xlane.xlu0 %260
        %v262 = vsub.f32 %v258, %v261
        %v263 = vmul.f32 %v262, 1.442695
        %v264 = vpow.pop %v263
        %v265 = vsel %vm162, %v264, 0.0
        %266 = vadd.xlane.f32.xlu0 %v265
        %v267 = vpop.xlane.xlu0 %266
        %v268 = vlog2.pop %v267
        %v269 = vmul.f32 %v268, 0.6931472
        %v270 = vadd.f32 %v261, %v269
        %v271 = vstv %s254
        %vm272 = vcmp.eq.s32.totalorder %v153, %v271
        %v273 = vsel %vm272, %v256, 0.0
        %v274 = vsel %vm162, %v273, 0.0
        %275 = vadd.xlane.f32.xlu0 %v274
        %v276 = vpop.xlane.xlu0 %275
        %p277 = scmp.lt.s32.totalorder %s252, 16
        %v278 = vsub.f32 %v270, %v276
        %s279 = scalar_select %p277, 1, 0
        %v280 = vstv %s279
        %vm281 = vcmp.eq.s32.totalorder %v280, 1
        %v282 = vsel %vm281, %v278, 0.0
        %v283 = vadd.f32 %v251, %v282
        %s284 = sadd.s32 %s155, 4
        %s285 = sld [smem:[#allocation3 + %s284]]
        %s286 = sld [smem:[#allocation4 + %s284]]
        %s287 = scalar_lea.vmem [#allocation5], %s285
        %v288 = vld [vmem:[%s287] sm:$0x1]
        %289 = vst [vmem:[%s143 + $0x4] sm:$0x1] %v288
        %v290 = vsel %vm154, %v288, -1e+30
        %v291 = vsel %vm162, %v290, -inf
        %292 = vmax.xlane.f32.xlu0 %v291
        %v293 = vpop.xlane.xlu0 %292
        %v294 = vsub.f32 %v290, %v293
        %v295 = vmul.f32 %v294, 1.442695
        %v296 = vpow.pop %v295
        %v297 = vsel %vm162, %v296, 0.0
        %298 = vadd.xlane.f32.xlu0 %v297
        %v299 = vpop.xlane.xlu0 %298
        %v300 = vlog2.pop %v299
        %v301 = vmul.f32 %v300, 0.6931472
        %v302 = vadd.f32 %v293, %v301
        %v303 = vstv %s286
        %vm304 = vcmp.eq.s32.totalorder %v153, %v303
        %v305 = vsel %vm304, %v288, 0.0
        %v306 = vsel %vm162, %v305, 0.0
        %307 = vadd.xlane.f32.xlu0 %v306
        %v308 = vpop.xlane.xlu0 %307
        %p309 = scmp.lt.s32.totalorder %s284, 16
        %v310 = vsub.f32 %v302, %v308
        %s311 = scalar_select %p309, 1, 0
        %v312 = vstv %s311
        %vm313 = vcmp.eq.s32.totalorder %v312, 1
        %v314 = vsel %vm313, %v310, 0.0
        %v315 = vadd.f32 %v283, %v314
        %s316 = sadd.s32 %s155, 5
        %s317 = sld [smem:[#allocation3 + %s316]]
        %s318 = sld [smem:[#allocation4 + %s316]]
        %s319 = scalar_lea.vmem [#allocation5], %s317
        %v320 = vld [vmem:[%s319] sm:$0x1]
        %321 = vst [vmem:[%s143 + $0x5] sm:$0x1] %v320
        %v322 = vsel %vm154, %v320, -1e+30
        %v323 = vsel %vm162, %v322, -inf
        %324 = vmax.xlane.f32.xlu0 %v323
        %v325 = vpop.xlane.xlu0 %324
        %v326 = vsub.f32 %v322, %v325
        %v327 = vmul.f32 %v326, 1.442695
        %v328 = vpow.pop %v327
        %v329 = vsel %vm162, %v328, 0.0
        %330 = vadd.xlane.f32.xlu0 %v329
        %v331 = vpop.xlane.xlu0 %330
        %v332 = vlog2.pop %v331
        %v333 = vmul.f32 %v332, 0.6931472
        %v334 = vadd.f32 %v325, %v333
        %v335 = vstv %s318
        %vm336 = vcmp.eq.s32.totalorder %v153, %v335
        %v337 = vsel %vm336, %v320, 0.0
        %v338 = vsel %vm162, %v337, 0.0
        %339 = vadd.xlane.f32.xlu0 %v338
        %v340 = vpop.xlane.xlu0 %339
        %p341 = scmp.lt.s32.totalorder %s316, 16
        %v342 = vsub.f32 %v334, %v340
        %s343 = scalar_select %p341, 1, 0
        %v344 = vstv %s343
        %vm345 = vcmp.eq.s32.totalorder %v344, 1
        %v346 = vsel %vm345, %v342, 0.0
        %v347 = vadd.f32 %v315, %v346
        %s348 = sadd.s32 %s155, 6
        %s349 = sld [smem:[#allocation3 + %s348]]
        %s350 = sld [smem:[#allocation4 + %s348]]
        %s351 = scalar_lea.vmem [#allocation5], %s349
        %v352 = vld [vmem:[%s351] sm:$0x1]
        %353 = vst [vmem:[%s143 + $0x6] sm:$0x1] %v352
        %v354 = vsel %vm154, %v352, -1e+30
        %v355 = vsel %vm162, %v354, -inf
        %356 = vmax.xlane.f32.xlu0 %v355
        %v357 = vpop.xlane.xlu0 %356
        %v358 = vsub.f32 %v354, %v357
        %v359 = vmul.f32 %v358, 1.442695
        %v360 = vpow.pop %v359
        %v361 = vsel %vm162, %v360, 0.0
        %362 = vadd.xlane.f32.xlu0 %v361
        %v363 = vpop.xlane.xlu0 %362
        %v364 = vlog2.pop %v363
        %v365 = vmul.f32 %v364, 0.6931472
        %v366 = vadd.f32 %v357, %v365
        %v367 = vstv %s350
        %vm368 = vcmp.eq.s32.totalorder %v153, %v367
        %v369 = vsel %vm368, %v352, 0.0
        %v370 = vsel %vm162, %v369, 0.0
        %371 = vadd.xlane.f32.xlu0 %v370
        %v372 = vpop.xlane.xlu0 %371
        %p373 = scmp.lt.s32.totalorder %s348, 16
        %v374 = vsub.f32 %v366, %v372
        %s375 = scalar_select %p373, 1, 0
        %v376 = vstv %s375
        %vm377 = vcmp.eq.s32.totalorder %v376, 1
        %v378 = vsel %vm377, %v374, 0.0
        %v379 = vadd.f32 %v347, %v378
        %s380 = sadd.s32 %s155, 7
        %s381 = sld [smem:[#allocation3 + %s380]]
        %s382 = sld [smem:[#allocation4 + %s380]]
        %s383 = scalar_lea.vmem [#allocation5], %s381
        %v384 = vld [vmem:[%s383] sm:$0x1]
        %385 = vst [vmem:[%s143 + $0x7] sm:$0x1] %v384
        %v386 = vsel %vm154, %v384, -1e+30
        %v387 = vsel %vm162, %v386, -inf
        %388 = vmax.xlane.f32.xlu0 %v387
        %v389 = vpop.xlane.xlu0 %388
        %v390 = vsub.f32 %v386, %v389
        %v391 = vmul.f32 %v390, 1.442695
        %v392 = vpow.pop %v391
        %v393 = vsel %vm162, %v392, 0.0
        %394 = vadd.xlane.f32.xlu0 %v393
        %v395 = vpop.xlane.xlu0 %394
        %v396 = vlog2.pop %v395
        %v397 = vmul.f32 %v396, 0.6931472
        %v398 = vadd.f32 %v389, %v397
        %v399 = vstv %s382
        %vm400 = vcmp.eq.s32.totalorder %v153, %v399
        %v401 = vsel %vm400, %v384, 0.0
        %v402 = vsel %vm162, %v401, 0.0
        %403 = vadd.xlane.f32.xlu0 %v402
        %v404 = vpop.xlane.xlu0 %403
        %p405 = scmp.lt.s32.totalorder %s380, 16
        %v406 = vsub.f32 %v398, %v404
        %s407 = scalar_select %p405, 1, 0
        %v408 = vstv %s407
        %vm409 = vcmp.eq.s32.totalorder %v408, 1
        %v410 = vsel %vm409, %v406, 0.0
        %v411 = vadd.f32 %v379, %v410
        %s412 = sld [smem:[#allocation10]]
        %s413 = vtos %v411
        %s414 = sadd.f32 %s412, %s413
        %s415 = scalar_lea.smem [#allocation10], 0
        %416 = sst [smem:[%s415]] %s414
        %p417 = scmp.eq.s32.totalorder %s29, 1
        // Predicated region
        $region33: #{tpu_custom_call.1} parent=23 // pred_check
          %p418 = pneg %p417
        $region34: #{tpu_custom_call.1} parent=23 // pred_check_branch
          %420 = sbr.rel (%p418) target = $region36
        $region35: #{tpu_custom_call.1} parent=23 // pred_region
          %s421 = sld [smem:[#allocation10]]
          %v422 = vrcp.pop 16.0
          %s423 = vtos %v422
          %s424 = smul.f32 %s421, %s423
          %425 = sst [smem:[%s415]] %s424
        $region36: #{tpu_custom_call.1} parent=23 // pred_fallthru
          _
        %s426 = sand.u32 %s58, 1
        %s427 = scalar_lea.sflag [#allocation7], %s426
        %s428 = sand.u32 %s58, 1
        %s429 = smul.addr %s428, 8
        %s430 = scalar_lea.vmem [#allocation9], %s429
        // Predicated region
        $region37: #{tpu_custom_call.1} parent=23 // pred_check
          %p431 = pneg %p68
        $region38: #{tpu_custom_call.1} parent=23 // pred_check_branch
          %433 = sbr.rel (%p431) target = $region40
        $region39: #{tpu_custom_call.1} parent=23 // pred_region
          %s435 = ssub.s32 128, 128
          %436 = vsyncadd %s427, %s435
          %s437 = smul.addr %s29, 128
          %s438 = scalar_lea.hbm %s3, %s437
          %s440 = sshll.u32 %s430, 4
          %s441 = int_to_ptr.vmem [resolvable:$true] %s440
          %443 = dma.vmem_to_hbm [thread:$0]  %s441, 128, %s438, %s427
        $region40: #{tpu_custom_call.1} parent=23 // pred_fallthru
          _
        // Predicated region
        $region41: #{tpu_custom_call.1} parent=23 // pred_check
          %p444 = pneg %p89
        $region42: #{tpu_custom_call.1} parent=23 // pred_check_branch
          %446 = sbr.rel (%p444) target = $region44
        $region43: #{tpu_custom_call.1} parent=23 // pred_region
          %s448 = ssub.s32 16, 16
          %449 = vsyncadd [#allocation8], %s448
          %452 = dma.smem_to_hbm [#allocation10], 16, %s4, [#allocation8]
        $region44: #{tpu_custom_call.1} parent=23 // pred_fallthru
          _
        // Predicated region
        $region45: #{tpu_custom_call.1} parent=23 // pred_check
          %p453 = pneg %p89
        $region46: #{tpu_custom_call.1} parent=23 // pred_check_branch
          %455 = sbr.rel (%p453) target = $region48
        $region47: #{tpu_custom_call.1} parent=23 // pred_region
          %456 = dma.done [#allocation8], 16
        $region48: #{tpu_custom_call.1} parent=23 // pred_fallthru
          _
        %457 = sfence
      $region24: #{tpu_custom_call.1} parent=5 // pred_fallthru
        _
      %p458 = scmp.le.s32.totalorder 2, %s24
      // Predicated region
      $region49: #{tpu_custom_call.1} parent=5 // pred_check
        %p459 = pneg %p458
      $region50: #{tpu_custom_call.1} parent=5 // pred_check_branch
        %461 = sbr.rel (%p459) target = $region52
      $region51: #{tpu_custom_call.1} parent=5 // pred_region
        %s462 = ssub.s32 %s24, 2
        // Predicated region
        $region53: #{tpu_custom_call.1} parent=51 // pred_check
          %p463 = pneg %p74
        $region54: #{tpu_custom_call.1} parent=51 // pred_check_branch
          %465 = sbr.rel (%p463) target = $region56
        $region55: #{tpu_custom_call.1} parent=51 // pred_region
          %s466 = sand.u32 %s59, 1
          %s467 = scalar_lea.sflag [#allocation7], %s466
          %s468 = sand.u32 %s59, 1
          %s469 = smul.addr %s468, 8
          %s470 = scalar_lea.vmem [#allocation9], %s469
          %471 = dma.done %s467, 128
        $region56: #{tpu_custom_call.1} parent=51 // pred_fallthru
          _
      $region52: #{tpu_custom_call.1} parent=5 // pred_fallthru
        _
    $region6: #{tpu_custom_call.1} parent=1 // loop_footer
      %s28 = sadd.s32 1, %s24
    $region7: #{tpu_custom_call.1} parent=1 // loop_footer_branch
      %23 = sbr.rel target = $region3
    $region8: #{tpu_custom_call.1} parent=1 // loop_exit
      _
    %472 = vsyncpa [#allocation6], 1
    %s473 = scalar_lea.sflag [#allocation6], 1
    %474 = vsyncpa %s473, 1
    %475 = vsyncpa [#allocation7], 1
    %s476 = scalar_lea.sflag [#allocation7], 1
    %477 = vsyncpa %s476, 1
    %478 = vsyncpa [#allocation8], 1
    %s479 = scalar_lea.sflag [#allocation8], 1
    %480 = vsyncpa %s479, 1

</llo_original>
